<compile_context>
chip_gen: v7x
topology: tpu7x:2x2x1
jax: 0.10.0
libtpu: 0.0.40
codegen_flags: <defaults>
</compile_context>

<pallas_src>
import functools

import jax
import jax.numpy as jnp
from jax import lax
from jax.experimental import pallas as pl
from jax.experimental.pallas import tpu as pltpu


def _round_up(x, m):
    return ((x + m - 1) // m) * m


def _bce_ranking_kernel(d0_ref, d1_ref, judge_ref,
                        a0_ref, a1_ref, a2_ref, a3_ref, b1_ref,
                        w2_ref, b2_ref, w3_ref, b3_ref,
                        out_ref, *, eps, block_lanes, total_elems):
    # Scalar loss accumulator: init on the first grid step.
    @pl.when(pl.program_id(0) == 0)
    def _():
        out_ref[...] = jnp.zeros_like(out_ref)

    d0 = d0_ref[...]          # (1, TL)
    d1 = d1_ref[...]          # (1, TL)
    judge = judge_ref[...]    # (1, TL)

    # Ratio features of the Dist2LogitLayer input stack.
    r0 = d0 / (d1 + eps)
    r1 = d1 / (d0 + eps)

    # Layer 1 (1x1 conv, 5->32) with the (d0 - d1) column folded into the
    # d0/d1 columns in the wrapper: pure VPU broadcast multiply-adds.
    h1 = (a0_ref[...] * d0 + a1_ref[...] * d1
          + a2_ref[...] * r0 + a3_ref[...] * r1 + b1_ref[...])     # (32, TL)
    h1 = jnp.where(h1 >= 0.0, h1, 0.2 * h1)                        # LeakyReLU(0.2)

    # Layer 2 (1x1 conv, 32->32): MXU matmul over the channel (sublane) dim.
    h2 = jnp.dot(w2_ref[...], h1, preferred_element_type=jnp.float32) + b2_ref[...]
    h2 = jnp.where(h2 >= 0.0, h2, 0.2 * h2)

    # Layer 3 (1x1 conv, 32->1) + sigmoid.
    z = jnp.dot(w3_ref[...], h2, preferred_element_type=jnp.float32) + b3_ref[...]
    logit = 1.0 / (1.0 + jnp.exp(-z))                              # (1, TL)

    # BCE against per = (judge + 1) / 2.
    # TODO(synk): torch BCELoss clamps log() at -100; not replicated (only
    # matters for fully saturated sigmoid outputs).
    per = (judge + 1.0) * 0.5
    bce = -(per * jnp.log(logit) + (1.0 - per) * jnp.log(1.0 - logit))

    # Mask out lanes that are pure padding of the flattened pixel axis.
    g = pl.program_id(0)
    idx = lax.broadcasted_iota(jnp.int32, (1, block_lanes), 1) + g * block_lanes
    mask = (idx < total_elems).astype(jnp.float32)

    out_ref[...] += jnp.sum(bce * mask).reshape(1, 1)


def bce_ranking_loss(d0, d1, judge, params, *, eps=0.1, block_lanes=4096):
    """Pallas BCERankingLoss.forward: mean BCE(Dist2LogitLayer(d0, d1), (judge+1)/2)."""
    w1, b1, w2, b2, w3, b3 = params
    chn_mid = w1.shape[0]

    assert d0.shape == d1.shape == judge.shape
    total = int(d0.size)

    # Fold the (d0 - d1) feature column of the first 1x1 conv into the d0/d1
    # columns so the kernel only needs 4 broadcast features.
    a0 = (w1[:, 0] + w1[:, 2]).reshape(chn_mid, 1)
    a1 = (w1[:, 1] - w1[:, 2]).reshape(chn_mid, 1)
    a2 = w1[:, 3].reshape(chn_mid, 1)
    a3 = w1[:, 4].reshape(chn_mid, 1)
    b1c = b1.reshape(chn_mid, 1)
    b2c = b2.reshape(chn_mid, 1)
    w3r = w3.reshape(1, chn_mid)
    b3c = b3.reshape(1, 1)

    # Lane-dense flattening: all N*C*H*W pixels go on the lane axis.
    tl = min(block_lanes, _round_up(total, 128))
    padded = _round_up(total, tl)
    grid = padded // tl

    def flat(x):
        x = x.reshape(1, total).astype(jnp.float32)
        if padded != total:
            x = jnp.pad(x, ((0, 0), (0, padded - total)))
        return x

    d0f, d1f, jf = flat(d0), flat(d1), flat(judge)

    kernel = functools.partial(_bce_ranking_kernel, eps=eps,
                               block_lanes=tl, total_elems=total)

    data_spec = pl.BlockSpec((1, tl), lambda g: (0, g))

    def const_spec(shape):
        return pl.BlockSpec(shape, lambda g: (0, 0))

    loss_sum = pl.pallas_call(
        kernel,
        out_shape=jax.ShapeDtypeStruct((1, 1), jnp.float32),
        grid_spec=pltpu.PrefetchScalarGridSpec(
            num_scalar_prefetch=0,
            grid=(grid,),
            in_specs=[
                data_spec, data_spec, data_spec,
                const_spec((chn_mid, 1)), const_spec((chn_mid, 1)),
                const_spec((chn_mid, 1)), const_spec((chn_mid, 1)),
                const_spec((chn_mid, 1)),
                const_spec((chn_mid, chn_mid)), const_spec((chn_mid, 1)),
                const_spec((1, chn_mid)), const_spec((1, 1)),
            ],
            out_specs=pl.BlockSpec((1, 1), lambda g: (0, 0)),
        ),
        compiler_params=pltpu.CompilerParams(
            dimension_semantics=("arbitrary",),
        ),
    )(d0f, d1f, jf, a0, a1, a2, a3, b1c, w2, b2c, w3r, b3c)

    # BCELoss(reduction='mean').
    return loss_sum[0, 0] / total


if __name__ == "__main__":
    chn_mid = 32
    key = jax.random.PRNGKey(0)
    k = jax.random.split(key, 9)

    # Deterministic weights for the Dist2LogitLayer's 1x1 convs.
    def uinit(kk, shape, fan_in):
        bound = 1.0 / jnp.sqrt(fan_in)
        return jax.random.uniform(kk, shape, jnp.float32, -bound, bound)

    w1 = uinit(k[0], (chn_mid, 5), 5.0)
    b1 = uinit(k[1], (chn_mid,), 5.0)
    w2 = uinit(k[2], (chn_mid, chn_mid), float(chn_mid))
    b2 = uinit(k[3], (chn_mid,), float(chn_mid))
    w3 = uinit(k[4], (1, chn_mid), float(chn_mid))
    b3 = uinit(k[5], (1,), float(chn_mid))
    params = (w1, b1, w2, b2, w3, b3)

    # Small inputs consistent with the module: distances >= 0, judge in [-1, 1].
    N, H, W = 2, 16, 16
    d0 = jax.random.uniform(k[6], (N, 1, H, W), jnp.float32, 0.0, 1.0)
    d1 = jax.random.uniform(k[7], (N, 1, H, W), jnp.float32, 0.0, 1.0)
    judge = jax.random.uniform(k[8], (N, 1, H, W), jnp.float32, -1.0, 1.0)

    loss = bce_ranking_loss(d0, d1, judge, params)
    loss = jax.block_until_ready(loss)

    # Pure-JAX reference of the same forward pass.
    def ref_loss(d0, d1, judge):
        eps = 0.1
        hp = jax.lax.Precision.HIGHEST
        feat = jnp.concatenate(
            [d0, d1, d0 - d1, d0 / (d1 + eps), d1 / (d0 + eps)], axis=1)
        h = jnp.einsum('oc,nchw->nohw', w1, feat, precision=hp) + b1[None, :, None, None]
        h = jnp.where(h >= 0, h, 0.2 * h)
        h = jnp.einsum('oc,nchw->nohw', w2, h, precision=hp) + b2[None, :, None, None]
        h = jnp.where(h >= 0, h, 0.2 * h)
        z = jnp.einsum('oc,nchw->nohw', w3, h, precision=hp) + b3[None, :, None, None]
        logit = 1.0 / (1.0 + jnp.exp(-z))
        per = (judge + 1.0) / 2.0
        bce = -(per * jnp.log(logit) + (1.0 - per) * jnp.log(1.0 - logit))
        return jnp.mean(bce)

    ref = ref_loss(d0, d1, judge)
    assert loss.shape == ()
    assert jnp.allclose(loss, ref, atol=1e-4, rtol=1e-4), (loss, ref)

    print("KERNEL_OK")
</pallas_src>

<mosaic_0001>
module attributes {stable_mosaic.version = 11 : i64} {
  func.func @_bce_ranking_kernel(%arg0: i32, %arg1: memref<1x512xf32, #tpu.memory_space<vmem>>, %arg2: memref<1x512xf32, #tpu.memory_space<vmem>>, %arg3: memref<1x512xf32, #tpu.memory_space<vmem>>, %arg4: memref<32x1xf32, #tpu.memory_space<vmem>>, %arg5: memref<32x1xf32, #tpu.memory_space<vmem>>, %arg6: memref<32x1xf32, #tpu.memory_space<vmem>>, %arg7: memref<32x1xf32, #tpu.memory_space<vmem>>, %arg8: memref<32x1xf32, #tpu.memory_space<vmem>>, %arg9: memref<32x32xf32, #tpu.memory_space<vmem>>, %arg10: memref<32x1xf32, #tpu.memory_space<vmem>>, %arg11: memref<1x32xf32, #tpu.memory_space<vmem>>, %arg12: memref<1x1xf32, #tpu.memory_space<vmem>>, %arg13: memref<1x1xf32, #tpu.memory_space<vmem>>) attributes {dimension_semantics = [#tpu.dimension_semantics<arbitrary>], iteration_bounds = array<i64: 1>, scalar_prefetch = 0 : i64, scratch_operands = 0 : i64, tpu.core_type = #tpu.core_type<tc>, window_params = [{transform_indices = @transform_0, window_bounds = array<i64: 1, 512>}, {transform_indices = @transform_1, window_bounds = array<i64: 1, 512>}, {transform_indices = @transform_2, window_bounds = array<i64: 1, 512>}, {pipeline_mode = #tpu.pipeline_mode<synchronous>, transform_indices = @transform_3, window_bounds = array<i64: 32, 1>}, {pipeline_mode = #tpu.pipeline_mode<synchronous>, transform_indices = @transform_4, window_bounds = array<i64: 32, 1>}, {pipeline_mode = #tpu.pipeline_mode<synchronous>, transform_indices = @transform_5, window_bounds = array<i64: 32, 1>}, {pipeline_mode = #tpu.pipeline_mode<synchronous>, transform_indices = @transform_6, window_bounds = array<i64: 32, 1>}, {pipeline_mode = #tpu.pipeline_mode<synchronous>, transform_indices = @transform_7, window_bounds = array<i64: 32, 1>}, {pipeline_mode = #tpu.pipeline_mode<synchronous>, transform_indices = @transform_8, window_bounds = array<i64: 32, 32>}, {pipeline_mode = #tpu.pipeline_mode<synchronous>, transform_indices = @transform_9, window_bounds = array<i64: 32, 1>}, {pipeline_mode = #tpu.pipeline_mode<synchronous>, transform_indices = @transform_10, window_bounds = array<i64: 1, 32>}, {pipeline_mode = #tpu.pipeline_mode<synchronous>, transform_indices = @transform_11, window_bounds = array<i64: 1, 1>}, {pipeline_mode = #tpu.pipeline_mode<synchronous>, transform_indices = @transform_12, window_bounds = array<i64: 1, 1>}]} {
    %c0_i32 = arith.constant 0 : i32
    %0 = arith.cmpi eq, %arg0, %c0_i32 : i32
    %1 = arith.extui %0 : i1 to i32
    %c0_i32_0 = arith.constant 0 : i32
    %2 = arith.cmpi ne, %1, %c0_i32_0 : i32
    scf.if %2 {
      %cst_45 = arith.constant 0.000000e+00 : f32
      %93 = vector.broadcast %cst_45 : f32 to vector<1x1xf32>
      %c0_46 = arith.constant 0 : index
      %c0_47 = arith.constant 0 : index
      %94 = vector.load %arg13[%c0_46, %c0_47] : memref<1x1xf32, #tpu.memory_space<vmem>>, vector<1x1xf32>
      tpu.vector_store %arg13[%c0_46, %c0_47], %93 {strides = array<i32>} : memref<1x1xf32, #tpu.memory_space<vmem>>, vector<1x1xf32>,
    } else {
    }
    %c0 = arith.constant 0 : index
    %c0_1 = arith.constant 0 : index
    %3 = vector.load %arg1[%c0, %c0_1] : memref<1x512xf32, #tpu.memory_space<vmem>>, vector<1x512xf32>
    %c0_2 = arith.constant 0 : index
    %c0_3 = arith.constant 0 : index
    %4 = vector.load %arg2[%c0_2, %c0_3] : memref<1x512xf32, #tpu.memory_space<vmem>>, vector<1x512xf32>
    %c0_4 = arith.constant 0 : index
    %c0_5 = arith.constant 0 : index
    %5 = vector.load %arg3[%c0_4, %c0_5] : memref<1x512xf32, #tpu.memory_space<vmem>>, vector<1x512xf32>
    %cst = arith.constant 1.000000e-01 : f32
    %6 = vector.broadcast %cst : f32 to vector<1x512xf32>
    %7 = arith.addf %4, %6 : vector<1x512xf32>
    %8 = arith.divf %3, %7 : vector<1x512xf32>
    %cst_6 = arith.constant 1.000000e-01 : f32
    %9 = vector.broadcast %cst_6 : f32 to vector<1x512xf32>
    %10 = arith.addf %3, %9 : vector<1x512xf32>
    %11 = arith.divf %4, %10 : vector<1x512xf32>
    %c0_7 = arith.constant 0 : index
    %c0_8 = arith.constant 0 : index
    %12 = vector.load %arg4[%c0_7, %c0_8] : memref<32x1xf32, #tpu.memory_space<vmem>>, vector<32x1xf32>
    %13 = vector.broadcast %12 : vector<32x1xf32> to vector<32x512xf32>
    %14 = vector.broadcast %3 : vector<1x512xf32> to vector<32x512xf32>
    %15 = arith.mulf %13, %14 : vector<32x512xf32>
    %c0_9 = arith.constant 0 : index
    %c0_10 = arith.constant 0 : index
    %16 = vector.load %arg5[%c0_9, %c0_10] : memref<32x1xf32, #tpu.memory_space<vmem>>, vector<32x1xf32>
    %17 = vector.broadcast %16 : vector<32x1xf32> to vector<32x512xf32>
    %18 = vector.broadcast %4 : vector<1x512xf32> to vector<32x512xf32>
    %19 = arith.mulf %17, %18 : vector<32x512xf32>
    %20 = arith.addf %15, %19 : vector<32x512xf32>
    %c0_11 = arith.constant 0 : index
    %c0_12 = arith.constant 0 : index
    %21 = vector.load %arg6[%c0_11, %c0_12] : memref<32x1xf32, #tpu.memory_space<vmem>>, vector<32x1xf32>
    %22 = vector.broadcast %21 : vector<32x1xf32> to vector<32x512xf32>
    %23 = vector.broadcast %8 : vector<1x512xf32> to vector<32x512xf32>
    %24 = arith.mulf %22, %23 : vector<32x512xf32>
    %25 = arith.addf %20, %24 : vector<32x512xf32>
    %c0_13 = arith.constant 0 : index
    %c0_14 = arith.constant 0 : index
    %26 = vector.load %arg7[%c0_13, %c0_14] : memref<32x1xf32, #tpu.memory_space<vmem>>, vector<32x1xf32>
    %27 = vector.broadcast %26 : vector<32x1xf32> to vector<32x512xf32>
    %28 = vector.broadcast %11 : vector<1x512xf32> to vector<32x512xf32>
    %29 = arith.mulf %27, %28 : vector<32x512xf32>
    %30 = arith.addf %25, %29 : vector<32x512xf32>
    %c0_15 = arith.constant 0 : index
    %c0_16 = arith.constant 0 : index
    %31 = vector.load %arg8[%c0_15, %c0_16] : memref<32x1xf32, #tpu.memory_space<vmem>>, vector<32x1xf32>
    %32 = vector.broadcast %31 : vector<32x1xf32> to vector<32x512xf32>
    %33 = arith.addf %30, %32 : vector<32x512xf32>
    %cst_17 = arith.constant 0.000000e+00 : f32
    %34 = vector.broadcast %cst_17 : f32 to vector<32x512xf32>
    %35 = arith.cmpf oge, %33, %34 : vector<32x512xf32>
    %cst_18 = arith.constant 2.000000e-01 : f32
    %36 = vector.broadcast %cst_18 : f32 to vector<32x512xf32>
    %37 = arith.mulf %36, %33 : vector<32x512xf32>
    %38 = arith.select %35, %33, %37 : vector<32x512xi1>, vector<32x512xf32>
    %c0_19 = arith.constant 0 : index
    %c0_20 = arith.constant 0 : index
    %39 = vector.load %arg9[%c0_19, %c0_20] : memref<32x32xf32, #tpu.memory_space<vmem>>, vector<32x32xf32>
    %cst_21 = arith.constant dense<0.000000e+00> : vector<32x512xf32>
    %40 = tpu.matmul %39, %38, %cst_21 {dimension_numbers = #tpu.dot_dimension_numbers<[1], [0], [0], [1], [0, 0, 1, 1], [], []>} : vector<32x32xf32>, vector<32x512xf32>, vector<32x512xf32> -> vector<32x512xf32>
    %c0_22 = arith.constant 0 : index
    %c0_23 = arith.constant 0 : index
    %41 = vector.load %arg10[%c0_22, %c0_23] : memref<32x1xf32, #tpu.memory_space<vmem>>, vector<32x1xf32>
    %42 = vector.broadcast %41 : vector<32x1xf32> to vector<32x512xf32>
    %43 = arith.addf %40, %42 : vector<32x512xf32>
    %cst_24 = arith.constant 0.000000e+00 : f32
    %44 = vector.broadcast %cst_24 : f32 to vector<32x512xf32>
    %45 = arith.cmpf oge, %43, %44 : vector<32x512xf32>
    %cst_25 = arith.constant 2.000000e-01 : f32
    %46 = vector.broadcast %cst_25 : f32 to vector<32x512xf32>
    %47 = arith.mulf %46, %43 : vector<32x512xf32>
    %48 = arith.select %45, %43, %47 : vector<32x512xi1>, vector<32x512xf32>
    %c0_26 = arith.constant 0 : index
    %c0_27 = arith.constant 0 : index
    %49 = vector.load %arg11[%c0_26, %c0_27] : memref<1x32xf32, #tpu.memory_space<vmem>>, vector<1x32xf32>
    %cst_28 = arith.constant dense<0.000000e+00> : vector<1x512xf32>
    %50 = tpu.matmul %49, %48, %cst_28 {dimension_numbers = #tpu.dot_dimension_numbers<[1], [0], [0], [1], [0, 0, 1, 1], [], []>} : vector<1x32xf32>, vector<32x512xf32>, vector<1x512xf32> -> vector<1x512xf32>
    %c0_29 = arith.constant 0 : index
    %c0_30 = arith.constant 0 : index
    %51 = vector.load %arg12[%c0_29, %c0_30] : memref<1x1xf32, #tpu.memory_space<vmem>>, vector<1x1xf32>
    %52 = vector.broadcast %51 : vector<1x1xf32> to vector<1x512xf32>
    %53 = arith.addf %50, %52 : vector<1x512xf32>
    %cst_31 = arith.constant 0.000000e+00 : f32
    %54 = vector.broadcast %cst_31 : f32 to vector<1x512xf32>
    %55 = arith.subf %54, %53 : vector<1x512xf32>
    %56 = math.exp %55 : vector<1x512xf32>
    %cst_32 = arith.constant 1.000000e+00 : f32
    %57 = vector.broadcast %cst_32 : f32 to vector<1x512xf32>
    %58 = arith.addf %57, %56 : vector<1x512xf32>
    %cst_33 = arith.constant 1.000000e+00 : f32
    %59 = vector.broadcast %cst_33 : f32 to vector<1x512xf32>
    %60 = arith.divf %59, %58 : vector<1x512xf32>
    %cst_34 = arith.constant 1.000000e+00 : f32
    %61 = vector.broadcast %cst_34 : f32 to vector<1x512xf32>
    %62 = arith.addf %5, %61 : vector<1x512xf32>
    %cst_35 = arith.constant 5.000000e-01 : f32
    %63 = vector.broadcast %cst_35 : f32 to vector<1x512xf32>
    %64 = arith.mulf %62, %63 : vector<1x512xf32>
    %65 = math.log %60 : vector<1x512xf32>
    %66 = arith.mulf %64, %65 : vector<1x512xf32>
    %cst_36 = arith.constant 1.000000e+00 : f32
    %67 = vector.broadcast %cst_36 : f32 to vector<1x512xf32>
    %68 = arith.subf %67, %64 : vector<1x512xf32>
    %cst_37 = arith.constant 1.000000e+00 : f32
    %69 = vector.broadcast %cst_37 : f32 to vector<1x512xf32>
    %70 = arith.subf %69, %60 : vector<1x512xf32>
    %71 = math.log %70 : vector<1x512xf32>
    %72 = arith.mulf %68, %71 : vector<1x512xf32>
    %73 = arith.addf %66, %72 : vector<1x512xf32>
    %cst_38 = arith.constant 0.000000e+00 : f32
    %74 = vector.broadcast %cst_38 : f32 to vector<1x512xf32>
    %75 = arith.subf %74, %73 : vector<1x512xf32>
    %76 = tpu.iota {dimensions = array<i32: 1>} : vector<1x512xi32>
    %c512_i32 = arith.constant 512 : i32
    %77 = arith.muli %arg0, %c512_i32 : i32
    %78 = vector.broadcast %77 : i32 to vector<1x512xi32>
    %79 = arith.addi %76, %78 : vector<1x512xi32>
    %c512_i32_39 = arith.constant 512 : i32
    %80 = vector.broadcast %c512_i32_39 : i32 to vector<1x512xi32>
    %81 = arith.cmpi slt, %79, %80 : vector<1x512xi32>
    %82 = arith.extui %81 : vector<1x512xi1> to vector<1x512xi32>
    %83 = arith.sitofp %82 : vector<1x512xi32> to vector<1x512xf32>
    %c0_40 = arith.constant 0 : index
    %c0_41 = arith.constant 0 : index
    %84 = vector.load %arg13[%c0_40, %c0_41] : memref<1x1xf32, #tpu.memory_space<vmem>>, vector<1x1xf32>
    %85 = arith.mulf %75, %83 : vector<1x512xf32>
    %86 = vector.shape_cast %85 : vector<1x512xf32> to vector<1x1x512xf32>
    %cst_42 = arith.constant dense<0.000000e+00> : vector<1xf32>
    %87 = vector.multi_reduction <add>, %86, %cst_42 [1, 2] : vector<1x1x512xf32> to vector<1xf32>
    %88 = vector.shape_cast %87 : vector<1xf32> to vector<1x1x1xf32>
    %89 = vector.extract %88[0, 0, 0] : f32 from vector<1x1x1xf32>
    %90 = vector.broadcast %89 : f32 to vector<1x1xf32>
    %91 = arith.addf %84, %90 : vector<1x1xf32>
    %c0_43 = arith.constant 0 : index
    %c0_44 = arith.constant 0 : index
    %92 = vector.load %arg13[%c0_43, %c0_44] : memref<1x1xf32, #tpu.memory_space<vmem>>, vector<1x1xf32>
    tpu.vector_store %arg13[%c0_43, %c0_44], %91 {strides = array<i32>} : memref<1x1xf32, #tpu.memory_space<vmem>>, vector<1x1xf32>,
    return
  }
  func.func @transform_0(%arg0: i32) -> (i32, i32) {
    %c0_i32 = arith.constant 0 : i32
    %c0_i32_0 = arith.constant 0 : i32
    return %c0_i32, %arg0 : i32, i32
  }
  func.func @transform_1(%arg0: i32) -> (i32, i32) {
    %c0_i32 = arith.constant 0 : i32
    %c0_i32_0 = arith.constant 0 : i32
    return %c0_i32, %arg0 : i32, i32
  }
  func.func @transform_2(%arg0: i32) -> (i32, i32) {
    %c0_i32 = arith.constant 0 : i32
    %c0_i32_0 = arith.constant 0 : i32
    return %c0_i32, %arg0 : i32, i32
  }
  func.func @transform_3(%arg0: i32) -> (i32, i32) {
    %c0_i32 = arith.constant 0 : i32
    %c0_i32_0 = arith.constant 0 : i32
    %c0_i32_1 = arith.constant 0 : i32
    return %c0_i32, %c0_i32_0 : i32, i32
  }
  func.func @transform_4(%arg0: i32) -> (i32, i32) {
    %c0_i32 = arith.constant 0 : i32
    %c0_i32_0 = arith.constant 0 : i32
    %c0_i32_1 = arith.constant 0 : i32
    return %c0_i32, %c0_i32_0 : i32, i32
  }
  func.func @transform_5(%arg0: i32) -> (i32, i32) {
    %c0_i32 = arith.constant 0 : i32
    %c0_i32_0 = arith.constant 0 : i32
    %c0_i32_1 = arith.constant 0 : i32
    return %c0_i32, %c0_i32_0 : i32, i32
  }
  func.func @transform_6(%arg0: i32) -> (i32, i32) {
    %c0_i32 = arith.constant 0 : i32
    %c0_i32_0 = arith.constant 0 : i32
    %c0_i32_1 = arith.constant 0 : i32
    return %c0_i32, %c0_i32_0 : i32, i32
  }
  func.func @transform_7(%arg0: i32) -> (i32, i32) {
    %c0_i32 = arith.constant 0 : i32
    %c0_i32_0 = arith.constant 0 : i32
    %c0_i32_1 = arith.constant 0 : i32
    return %c0_i32, %c0_i32_0 : i32, i32
  }
  func.func @transform_8(%arg0: i32) -> (i32, i32) {
    %c0_i32 = arith.constant 0 : i32
    %c0_i32_0 = arith.constant 0 : i32
    %c0_i32_1 = arith.constant 0 : i32
    return %c0_i32, %c0_i32_0 : i32, i32
  }
  func.func @transform_9(%arg0: i32) -> (i32, i32) {
    %c0_i32 = arith.constant 0 : i32
    %c0_i32_0 = arith.constant 0 : i32
    %c0_i32_1 = arith.constant 0 : i32
    return %c0_i32, %c0_i32_0 : i32, i32
  }
  func.func @transform_10(%arg0: i32) -> (i32, i32) {
    %c0_i32 = arith.constant 0 : i32
    %c0_i32_0 = arith.constant 0 : i32
    %c0_i32_1 = arith.constant 0 : i32
    return %c0_i32, %c0_i32_0 : i32, i32
  }
  func.func @transform_11(%arg0: i32) -> (i32, i32) {
    %c0_i32 = arith.constant 0 : i32
    %c0_i32_0 = arith.constant 0 : i32
    %c0_i32_1 = arith.constant 0 : i32
    return %c0_i32, %c0_i32_0 : i32, i32
  }
  func.func @transform_12(%arg0: i32) -> (i32, i32) {
    %c0_i32 = arith.constant 0 : i32
    %c0_i32_0 = arith.constant 0 : i32
    %c0_i32_1 = arith.constant 0 : i32
    return %c0_i32, %c0_i32_0 : i32, i32
  }
}

</mosaic_0001>

<llo_original>
// kernel: tpu_custom_call.1
$region0: #{tpu_custom_call.1}
  #allocation0 [shape = 'u32[]', space=smem, size = 0x4, offset = 0x4, fixed_abs, tag = 'smem constant byte address 0x4 - core index']
  #allocation1 [shape = 'u32[144,128]{1,0:T(1,128)}', space=vmem, size = 0x12000, scoped, tag = 'internal scratch']
  #allocation2 [shape = 'f32[1,1]{1,0:T(1,128)S(1)}', space=vmem, size = 0x200, scoped, tag = 'scoped memory for tpu_custom_call.1']
  %s0 = inlined_call_operand.vmem [shape: f32[1,512], index: 0, kind: input, shape index: {}]
  %s1 = inlined_call_operand.vmem [shape: f32[1,512], index: 1, kind: input, shape index: {}]
  %s2 = inlined_call_operand.vmem [shape: f32[1,512], index: 2, kind: input, shape index: {}]
  %s3 = inlined_call_operand.vmem [shape: f32[32,1], index: 3, kind: input, shape index: {}]
  %s4 = inlined_call_operand.vmem [shape: f32[32,1], index: 4, kind: input, shape index: {}]
  %s5 = inlined_call_operand.vmem [shape: f32[32,1], index: 5, kind: input, shape index: {}]
  %s6 = inlined_call_operand.vmem [shape: f32[32,1], index: 6, kind: input, shape index: {}]
  %s7 = inlined_call_operand.vmem [shape: f32[32,1], index: 7, kind: input, shape index: {}]
  %s8 = inlined_call_operand.vmem [shape: f32[32,32], index: 8, kind: input, shape index: {}]
  %s9 = inlined_call_operand.vmem [shape: f32[32,1], index: 9, kind: input, shape index: {}]
  %s10 = inlined_call_operand.vmem [shape: f32[1,32], index: 10, kind: input, shape index: {}]
  %s11 = inlined_call_operand.<no memory space> [shape: f32[1,1], index: 11, kind: input, shape index: {}]
  %s12 = inlined_call_operand.hbm [shape: f32[1,1], index: 12, kind: output, shape index: {}]
  %s13 = sld [smem:[#allocation0]]
  $region62: #{tpu_custom_call.1} parent=0
    _
  %s15 = ssub.s32 1, %s13
  %s16 = scalar_select 0, %s15, %s13
  %v17 = vstv %s11
  %18 = vst [vmem:[#allocation2] sm:$0x1] %v17
  $region1: #{tpu_custom_call.1} parent=0
    #allocation3 [shape = 'u8[512]{0}', space=vmem, size = 0x400, scoped, tag = 'output window, operand 0, single buffered']
    #allocation4 [shape = 's32[1]{0}', space=sflag, size = 0x4, scoped, tag = 'scoped memory for tpu_custom_call.1']
    %19 = vsyncpa [#allocation4], 0
    // Predicated region
    $region2: #{tpu_custom_call.1} parent=1 // pred_check
      _
    $region3: #{tpu_custom_call.1} parent=1 // pred_check_branch
      %21 = sbr.rel (0) target = $region5
    $region4: #{tpu_custom_call.1} parent=1 // pred_region
      _
    $region5: #{tpu_custom_call.1} parent=1 // pred_fallthru
      _
    // Predicated region
    $region6: #{tpu_custom_call.1} parent=1 // pred_check
      _
    $region7: #{tpu_custom_call.1} parent=1 // pred_check_branch
      %23 = sbr.rel (0) target = $region9
    $region8: #{tpu_custom_call.1} parent=1 // pred_region
      _
    $region9: #{tpu_custom_call.1} parent=1 // pred_fallthru
      _
    // Predicated region
    $region10: #{tpu_custom_call.1} parent=1 // pred_check
      _
    $region11: #{tpu_custom_call.1} parent=1 // pred_check_branch
      %25 = sbr.rel (0) target = $region13
    $region12: #{tpu_custom_call.1} parent=1 // pred_region
      _
    $region13: #{tpu_custom_call.1} parent=1 // pred_fallthru
      _
    // Predicated region
    $region14: #{tpu_custom_call.1} parent=1 // pred_check
      _
    $region15: #{tpu_custom_call.1} parent=1 // pred_check_branch
      %27 = sbr.rel (0) target = $region17
    $region16: #{tpu_custom_call.1} parent=1 // pred_region
      _
    $region17: #{tpu_custom_call.1} parent=1 // pred_fallthru
      _
    // Predicated region
    $region18: #{tpu_custom_call.1} parent=1 // pred_check
      _
    $region19: #{tpu_custom_call.1} parent=1 // pred_check_branch
      %29 = sbr.rel (0) target = $region21
    $region20: #{tpu_custom_call.1} parent=1 // pred_region
      _
    $region21: #{tpu_custom_call.1} parent=1 // pred_fallthru
      _
    // Predicated region
    $region22: #{tpu_custom_call.1} parent=1 // pred_check
      _
    $region23: #{tpu_custom_call.1} parent=1 // pred_check_branch
      %31 = sbr.rel (0) target = $region25
    $region24: #{tpu_custom_call.1} parent=1 // pred_region
      _
    $region25: #{tpu_custom_call.1} parent=1 // pred_fallthru
      _
    // Predicated region
    $region26: #{tpu_custom_call.1} parent=1 // pred_check
      _
    $region27: #{tpu_custom_call.1} parent=1 // pred_check_branch
      %33 = sbr.rel (0) target = $region29
    $region28: #{tpu_custom_call.1} parent=1 // pred_region
      _
    $region29: #{tpu_custom_call.1} parent=1 // pred_fallthru
      _
    // Predicated region
    $region30: #{tpu_custom_call.1} parent=1 // pred_check
      _
    $region31: #{tpu_custom_call.1} parent=1 // pred_check_branch
      %35 = sbr.rel (0) target = $region33
    $region32: #{tpu_custom_call.1} parent=1 // pred_region
      _
    $region33: #{tpu_custom_call.1} parent=1 // pred_fallthru
      _
    // Predicated region
    $region34: #{tpu_custom_call.1} parent=1 // pred_check
      _
    $region35: #{tpu_custom_call.1} parent=1 // pred_check_branch
      %37 = sbr.rel (0) target = $region37
    $region36: #{tpu_custom_call.1} parent=1 // pred_region
      _
    $region37: #{tpu_custom_call.1} parent=1 // pred_fallthru
      _
    // Predicated region
    $region38: #{tpu_custom_call.1} parent=1 // pred_check
      _
    $region39: #{tpu_custom_call.1} parent=1 // pred_check_branch
      %39 = sbr.rel (0) target = $region41
    $region40: #{tpu_custom_call.1} parent=1 // pred_region
      _
    $region41: #{tpu_custom_call.1} parent=1 // pred_fallthru
      _
    // Predicated region
    $region42: #{tpu_custom_call.1} parent=1 // pred_check
      _
    $region43: #{tpu_custom_call.1} parent=1 // pred_check_branch
      %41 = sbr.rel (0) target = $region45
    $region44: #{tpu_custom_call.1} parent=1 // pred_region
      _
    $region45: #{tpu_custom_call.1} parent=1 // pred_fallthru
      _
    // Predicated region
    $region46: #{tpu_custom_call.1} parent=1 // pred_check
      _
    $region47: #{tpu_custom_call.1} parent=1 // pred_check_branch
      %43 = sbr.rel (0) target = $region49
    $region48: #{tpu_custom_call.1} parent=1 // pred_region
      _
    $region49: #{tpu_custom_call.1} parent=1 // pred_fallthru
      _
    %p44 = scmp.eq.s32.totalorder 0, 0
    // Predicated region
    $region50: #{tpu_custom_call.1} parent=1 // pred_check
      %p45 = pneg %p44
    $region51: #{tpu_custom_call.1} parent=1 // pred_check_branch
      %47 = sbr.rel (%p45) target = $region53
    $region52: #{tpu_custom_call.1} parent=1 // pred_region
      %vm48 = vcmask 0
      %49 = vst.msk [vmem:[#allocation3] sm:$0x1] %vm48, 0.0
    $region53: #{tpu_custom_call.1} parent=1 // pred_fallthru
      _
    %v50 = vld [vmem:[%s0] sm:$0xf]
    %v51 = vld [vmem:[%s1] sm:$0xf]
    %v52 = vld [vmem:[%s2] sm:$0xf]
    %v53 = vadd.f32 %v51, 0.1
    %v54 = vrcp.pop %v53
    %v55 = vmul.f32 %v50, %v54
    %v56 = vadd.f32 %v50, 0.1
    %v57 = vrcp.pop %v56
    %v58 = vmul.f32 %v51, %v57
    %v59 = vld [vmem:[%s3] sm:$0xff]
    %v60 = vld [vmem:[%s3 + $0x8] sm:$0xff]
    %v61 = vld [vmem:[%s3 + $0x10] sm:$0xff]
    %v62 = vld [vmem:[%s3 + $0x18] sm:$0xff]
    %64 = vset.pattern.permute.xlu0 0
    %65 = vperm.xlu0 %64, %v59
    %v66 = vpop.permute.xlu0 %65
    %69 = vset.pattern.permute.xlu0 0
    %70 = vperm.xlu0 %69, %v60
    %v71 = vpop.permute.xlu0 %70
    %74 = vset.pattern.permute.xlu0 0
    %75 = vperm.xlu0 %74, %v61
    %v76 = vpop.permute.xlu0 %75
    %79 = vset.pattern.permute.xlu0 0
    %80 = vperm.xlu0 %79, %v62
    %v81 = vpop.permute.xlu0 %80
    %v84 = vlaneseq
    %v85 = vshrl.u32 %v84, 7
    %v86 = vsub.s32 0, %v85
    %v87 = vrot.slane %v50, %v86
    %v88 = vlaneseq
    %v89 = vshrl.u32 %v88, 7
    %v90 = vsub.s32 1, %v89
    %v91 = vrot.slane %v50, %v90
    %v92 = vlaneseq
    %v93 = vshrl.u32 %v92, 7
    %v94 = vsub.s32 2, %v93
    %v95 = vrot.slane %v50, %v94
    %v96 = vlaneseq
    %v97 = vshrl.u32 %v96, 7
    %v98 = vsub.s32 3, %v97
    %v99 = vrot.slane %v50, %v98
    %v104 = vmul.f32 %v66, %v87
    %v105 = vmul.f32 %v66, %v91
    %v106 = vmul.f32 %v66, %v95
    %v107 = vmul.f32 %v66, %v99
    %v108 = vmul.f32 %v71, %v87
    %v109 = vmul.f32 %v71, %v91
    %v110 = vmul.f32 %v71, %v95
    %v111 = vmul.f32 %v71, %v99
    %v112 = vmul.f32 %v76, %v87
    %v113 = vmul.f32 %v76, %v91
    %v114 = vmul.f32 %v76, %v95
    %v115 = vmul.f32 %v76, %v99
    %v116 = vmul.f32 %v81, %v87
    %v117 = vmul.f32 %v81, %v91
    %v118 = vmul.f32 %v81, %v95
    %v119 = vmul.f32 %v81, %v99
    %v120 = vld [vmem:[%s4] sm:$0xff]
    %v121 = vld [vmem:[%s4 + $0x8] sm:$0xff]
    %v122 = vld [vmem:[%s4 + $0x10] sm:$0xff]
    %v123 = vld [vmem:[%s4 + $0x18] sm:$0xff]
    %125 = vset.pattern.permute.xlu0 0
    %126 = vperm.xlu0 %125, %v120
    %v127 = vpop.permute.xlu0 %126
    %130 = vset.pattern.permute.xlu0 0
    %131 = vperm.xlu0 %130, %v121
    %v132 = vpop.permute.xlu0 %131
    %135 = vset.pattern.permute.xlu0 0
    %136 = vperm.xlu0 %135, %v122
    %v137 = vpop.permute.xlu0 %136
    %140 = vset.pattern.permute.xlu0 0
    %141 = vperm.xlu0 %140, %v123
    %v142 = vpop.permute.xlu0 %141
    %v145 = vlaneseq
    %v146 = vshrl.u32 %v145, 7
    %v147 = vsub.s32 0, %v146
    %v148 = vrot.slane %v51, %v147
    %v149 = vlaneseq
    %v150 = vshrl.u32 %v149, 7
    %v151 = vsub.s32 1, %v150
    %v152 = vrot.slane %v51, %v151
    %v153 = vlaneseq
    %v154 = vshrl.u32 %v153, 7
    %v155 = vsub.s32 2, %v154
    %v156 = vrot.slane %v51, %v155
    %v157 = vlaneseq
    %v158 = vshrl.u32 %v157, 7
    %v159 = vsub.s32 3, %v158
    %v160 = vrot.slane %v51, %v159
    %v165 = vmul.f32 %v127, %v148
    %v166 = vmul.f32 %v127, %v152
    %v167 = vmul.f32 %v127, %v156
    %v168 = vmul.f32 %v127, %v160
    %v169 = vmul.f32 %v132, %v148
    %v170 = vmul.f32 %v132, %v152
    %v171 = vmul.f32 %v132, %v156
    %v172 = vmul.f32 %v132, %v160
    %v173 = vmul.f32 %v137, %v148
    %v174 = vmul.f32 %v137, %v152
    %v175 = vmul.f32 %v137, %v156
    %v176 = vmul.f32 %v137, %v160
    %v177 = vmul.f32 %v142, %v148
    %v178 = vmul.f32 %v142, %v152
    %v179 = vmul.f32 %v142, %v156
    %v180 = vmul.f32 %v142, %v160
    %v181 = vadd.f32 %v104, %v165
    %v182 = vadd.f32 %v105, %v166
    %v183 = vadd.f32 %v106, %v167
    %v184 = vadd.f32 %v107, %v168
    %v185 = vadd.f32 %v108, %v169
    %v186 = vadd.f32 %v109, %v170
    %v187 = vadd.f32 %v110, %v171
    %v188 = vadd.f32 %v111, %v172
    %v189 = vadd.f32 %v112, %v173
    %v190 = vadd.f32 %v113, %v174
    %v191 = vadd.f32 %v114, %v175
    %v192 = vadd.f32 %v115, %v176
    %v193 = vadd.f32 %v116, %v177
    %v194 = vadd.f32 %v117, %v178
    %v195 = vadd.f32 %v118, %v179
    %v196 = vadd.f32 %v119, %v180
    %v197 = vld [vmem:[%s5] sm:$0xff]
    %v198 = vld [vmem:[%s5 + $0x8] sm:$0xff]
    %v199 = vld [vmem:[%s5 + $0x10] sm:$0xff]
    %v200 = vld [vmem:[%s5 + $0x18] sm:$0xff]
    %202 = vset.pattern.permute.xlu0 0
    %203 = vperm.xlu0 %202, %v197
    %v204 = vpop.permute.xlu0 %203
    %207 = vset.pattern.permute.xlu0 0
    %208 = vperm.xlu0 %207, %v198
    %v209 = vpop.permute.xlu0 %208
    %212 = vset.pattern.permute.xlu0 0
    %213 = vperm.xlu0 %212, %v199
    %v214 = vpop.permute.xlu0 %213
    %217 = vset.pattern.permute.xlu0 0
    %218 = vperm.xlu0 %217, %v200
    %v219 = vpop.permute.xlu0 %218
    %v222 = vlaneseq
    %v223 = vshrl.u32 %v222, 7
    %v224 = vsub.s32 0, %v223
    %v225 = vrot.slane %v55, %v224
    %v226 = vlaneseq
    %v227 = vshrl.u32 %v226, 7
    %v228 = vsub.s32 1, %v227
    %v229 = vrot.slane %v55, %v228
    %v230 = vlaneseq
    %v231 = vshrl.u32 %v230, 7
    %v232 = vsub.s32 2, %v231
    %v233 = vrot.slane %v55, %v232
    %v234 = vlaneseq
    %v235 = vshrl.u32 %v234, 7
    %v236 = vsub.s32 3, %v235
    %v237 = vrot.slane %v55, %v236
    %v242 = vmul.f32 %v204, %v225
    %v243 = vmul.f32 %v204, %v229
    %v244 = vmul.f32 %v204, %v233
    %v245 = vmul.f32 %v204, %v237
    %v246 = vmul.f32 %v209, %v225
    %v247 = vmul.f32 %v209, %v229
    %v248 = vmul.f32 %v209, %v233
    %v249 = vmul.f32 %v209, %v237
    %v250 = vmul.f32 %v214, %v225
    %v251 = vmul.f32 %v214, %v229
    %v252 = vmul.f32 %v214, %v233
    %v253 = vmul.f32 %v214, %v237
    %v254 = vmul.f32 %v219, %v225
    %v255 = vmul.f32 %v219, %v229
    %v256 = vmul.f32 %v219, %v233
    %v257 = vmul.f32 %v219, %v237
    %v258 = vadd.f32 %v181, %v242
    %v259 = vadd.f32 %v182, %v243
    %v260 = vadd.f32 %v183, %v244
    %v261 = vadd.f32 %v184, %v245
    %v262 = vadd.f32 %v185, %v246
    %v263 = vadd.f32 %v186, %v247
    %v264 = vadd.f32 %v187, %v248
    %v265 = vadd.f32 %v188, %v249
    %v266 = vadd.f32 %v189, %v250
    %v267 = vadd.f32 %v190, %v251
    %v268 = vadd.f32 %v191, %v252
    %v269 = vadd.f32 %v192, %v253
    %v270 = vadd.f32 %v193, %v254
    %v271 = vadd.f32 %v194, %v255
    %v272 = vadd.f32 %v195, %v256
    %v273 = vadd.f32 %v196, %v257
    %v274 = vld [vmem:[%s6] sm:$0xff]
    %v275 = vld [vmem:[%s6 + $0x8] sm:$0xff]
    %v276 = vld [vmem:[%s6 + $0x10] sm:$0xff]
    %v277 = vld [vmem:[%s6 + $0x18] sm:$0xff]
    %279 = vset.pattern.permute.xlu0 0
    %280 = vperm.xlu0 %279, %v274
    %v281 = vpop.permute.xlu0 %280
    %284 = vset.pattern.permute.xlu0 0
    %285 = vperm.xlu0 %284, %v275
    %v286 = vpop.permute.xlu0 %285
    %289 = vset.pattern.permute.xlu0 0
    %290 = vperm.xlu0 %289, %v276
    %v291 = vpop.permute.xlu0 %290
    %294 = vset.pattern.permute.xlu0 0
    %295 = vperm.xlu0 %294, %v277
    %v296 = vpop.permute.xlu0 %295
    %v299 = vlaneseq
    %v300 = vshrl.u32 %v299, 7
    %v301 = vsub.s32 0, %v300
    %v302 = vrot.slane %v58, %v301
    %v303 = vlaneseq
    %v304 = vshrl.u32 %v303, 7
    %v305 = vsub.s32 1, %v304
    %v306 = vrot.slane %v58, %v305
    %v307 = vlaneseq
    %v308 = vshrl.u32 %v307, 7
    %v309 = vsub.s32 2, %v308
    %v310 = vrot.slane %v58, %v309
    %v311 = vlaneseq
    %v312 = vshrl.u32 %v311, 7
    %v313 = vsub.s32 3, %v312
    %v314 = vrot.slane %v58, %v313
    %v319 = vmul.f32 %v281, %v302
    %v320 = vmul.f32 %v281, %v306
    %v321 = vmul.f32 %v281, %v310
    %v322 = vmul.f32 %v281, %v314
    %v323 = vmul.f32 %v286, %v302
    %v324 = vmul.f32 %v286, %v306
    %v325 = vmul.f32 %v286, %v310
    %v326 = vmul.f32 %v286, %v314
    %v327 = vmul.f32 %v291, %v302
    %v328 = vmul.f32 %v291, %v306
    %v329 = vmul.f32 %v291, %v310
    %v330 = vmul.f32 %v291, %v314
    %v331 = vmul.f32 %v296, %v302
    %v332 = vmul.f32 %v296, %v306
    %v333 = vmul.f32 %v296, %v310
    %v334 = vmul.f32 %v296, %v314
    %v335 = vadd.f32 %v258, %v319
    %v336 = vadd.f32 %v259, %v320
    %v337 = vadd.f32 %v260, %v321
    %v338 = vadd.f32 %v261, %v322
    %v339 = vadd.f32 %v262, %v323
    %v340 = vadd.f32 %v263, %v324
    %v341 = vadd.f32 %v264, %v325
    %v342 = vadd.f32 %v265, %v326
    %v343 = vadd.f32 %v266, %v327
    %v344 = vadd.f32 %v267, %v328
    %v345 = vadd.f32 %v268, %v329
    %v346 = vadd.f32 %v269, %v330
    %v347 = vadd.f32 %v270, %v331
    %v348 = vadd.f32 %v271, %v332
    %v349 = vadd.f32 %v272, %v333
    %v350 = vadd.f32 %v273, %v334
    %v351 = vld [vmem:[%s7] sm:$0xff]
    %v352 = vld [vmem:[%s7 + $0x8] sm:$0xff]
    %v353 = vld [vmem:[%s7 + $0x10] sm:$0xff]
    %v354 = vld [vmem:[%s7 + $0x18] sm:$0xff]
    %356 = vset.pattern.permute.xlu0 0
    %357 = vperm.xlu0 %356, %v351
    %v358 = vpop.permute.xlu0 %357
    %361 = vset.pattern.permute.xlu0 0
    %362 = vperm.xlu0 %361, %v352
    %v363 = vpop.permute.xlu0 %362
    %366 = vset.pattern.permute.xlu0 0
    %367 = vperm.xlu0 %366, %v353
    %v368 = vpop.permute.xlu0 %367
    %371 = vset.pattern.permute.xlu0 0
    %372 = vperm.xlu0 %371, %v354
    %v373 = vpop.permute.xlu0 %372
    %v375 = vadd.f32 %v335, %v358
    %v376 = vadd.f32 %v336, %v358
    %v377 = vadd.f32 %v337, %v358
    %v378 = vadd.f32 %v338, %v358
    %v379 = vadd.f32 %v339, %v363
    %v380 = vadd.f32 %v340, %v363
    %v381 = vadd.f32 %v341, %v363
    %v382 = vadd.f32 %v342, %v363
    %v383 = vadd.f32 %v343, %v368
    %v384 = vadd.f32 %v344, %v368
    %v385 = vadd.f32 %v345, %v368
    %v386 = vadd.f32 %v346, %v368
    %v387 = vadd.f32 %v347, %v373
    %v388 = vadd.f32 %v348, %v373
    %v389 = vadd.f32 %v349, %v373
    %v390 = vadd.f32 %v350, %v373
    %vm391 = vcmp.ge.f32.partialorder %v375, 0.0
    %vm392 = vcmp.ge.f32.partialorder %v376, 0.0
    %vm393 = vcmp.ge.f32.partialorder %v377, 0.0
    %vm394 = vcmp.ge.f32.partialorder %v378, 0.0
    %vm395 = vcmp.ge.f32.partialorder %v379, 0.0
    %vm396 = vcmp.ge.f32.partialorder %v380, 0.0
    %vm397 = vcmp.ge.f32.partialorder %v381, 0.0
    %vm398 = vcmp.ge.f32.partialorder %v382, 0.0
    %vm399 = vcmp.ge.f32.partialorder %v383, 0.0
    %vm400 = vcmp.ge.f32.partialorder %v384, 0.0
    %vm401 = vcmp.ge.f32.partialorder %v385, 0.0
    %vm402 = vcmp.ge.f32.partialorder %v386, 0.0
    %vm403 = vcmp.ge.f32.partialorder %v387, 0.0
    %vm404 = vcmp.ge.f32.partialorder %v388, 0.0
    %vm405 = vcmp.ge.f32.partialorder %v389, 0.0
    %vm406 = vcmp.ge.f32.partialorder %v390, 0.0
    %v407 = vmul.f32 %v375, 0.2
    %v408 = vmul.f32 %v376, 0.2
    %v409 = vmul.f32 %v377, 0.2
    %v410 = vmul.f32 %v378, 0.2
    %v411 = vmul.f32 %v379, 0.2
    %v412 = vmul.f32 %v380, 0.2
    %v413 = vmul.f32 %v381, 0.2
    %v414 = vmul.f32 %v382, 0.2
    %v415 = vmul.f32 %v383, 0.2
    %v416 = vmul.f32 %v384, 0.2
    %v417 = vmul.f32 %v385, 0.2
    %v418 = vmul.f32 %v386, 0.2
    %v419 = vmul.f32 %v387, 0.2
    %v420 = vmul.f32 %v388, 0.2
    %v421 = vmul.f32 %v389, 0.2
    %v422 = vmul.f32 %v390, 0.2
    %v423 = vsel %vm391, %v375, %v407
    %v424 = vsel %vm392, %v376, %v408
    %v425 = vsel %vm393, %v377, %v409
    %v426 = vsel %vm394, %v378, %v410
    %v427 = vsel %vm395, %v379, %v411
    %v428 = vsel %vm396, %v380, %v412
    %v429 = vsel %vm397, %v381, %v413
    %v430 = vsel %vm398, %v382, %v414
    %v431 = vsel %vm399, %v383, %v415
    %v432 = vsel %vm400, %v384, %v416
    %v433 = vsel %vm401, %v385, %v417
    %v434 = vsel %vm402, %v386, %v418
    %v435 = vsel %vm403, %v387, %v419
    %v436 = vsel %vm404, %v388, %v420
    %v437 = vsel %vm405, %v389, %v421
    %v438 = vsel %vm406, %v390, %v422
    %v439 = vld [vmem:[%s8] sm:$0xff]
    %v440 = vld [vmem:[%s8 + $0x8] sm:$0xff]
    %v441 = vld [vmem:[%s8 + $0x10] sm:$0xff]
    %v442 = vld [vmem:[%s8 + $0x18] sm:$0xff]
    %v443 = vld [vmem:[%s9] sm:$0xff]
    %v444 = vld [vmem:[%s9 + $0x8] sm:$0xff]
    %v445 = vld [vmem:[%s9 + $0x10] sm:$0xff]
    %v446 = vld [vmem:[%s9 + $0x18] sm:$0xff]
    %448 = vset.pattern.permute.xlu0 0
    %449 = vperm.xlu0 %448, %v443
    %v450 = vpop.permute.xlu0 %449
    %453 = vset.pattern.permute.xlu0 0
    %454 = vperm.xlu0 %453, %v444
    %v455 = vpop.permute.xlu0 %454
    %458 = vset.pattern.permute.xlu0 0
    %459 = vperm.xlu0 %458, %v445
    %v460 = vpop.permute.xlu0 %459
    %463 = vset.pattern.permute.xlu0 0
    %464 = vperm.xlu0 %463, %v446
    %v465 = vpop.permute.xlu0 %464
    %vm467 = vcmask 261120
    %v469 = vsel %vm467, %v439, 0
    %v472 = vsel %vm467, %v440, 0
    %v475 = vsel %vm467, %v441, 0
    %v478 = vsel %vm467, %v442, 0
    %480 = vmatprep.subr.mxu0 %v424
    %481 = vmatpush1.msra.mxu0 %v423
    %482 = vmatprep.subr.mxu0 %v428
    %483 = vmatpush1.msra.mxu0 %v427
    %484 = vmatprep.subr.mxu0 %v432
    %485 = vmatpush1.msra.mxu0 %v431
    %486 = vmatprep.subr.mxu0 %v436
    %487 = vmatpush1.msra.mxu0 %v435
    %488 = vmatprep.subr.mxu0 0.0
    %489 = vmatpush1.msra.mxu0 0.0
    %490 = vmatprep.subr.mxu0 0.0
    %491 = vmatpush1.msra.mxu0 0.0
    %492 = vmatprep.subr.mxu0 0.0
    %493 = vmatpush1.msra.mxu0 0.0
    %494 = vmatprep.subr.mxu0 0.0
    %495 = vmatpush1.msra.mxu0 0.0
    %496 = vmatprep.subr.mxu0 0.0
    %497 = vmatpush1.msra.mxu0 0.0
    %498 = vmatprep.subr.mxu0 0.0
    %499 = vmatpush1.msra.mxu0 0.0
    %500 = vmatprep.subr.mxu0 0.0
    %501 = vmatpush1.msra.mxu0 0.0
    %502 = vmatprep.subr.mxu0 0.0
    %503 = vmatpush1.msra.mxu0 0.0
    %504 = vmatprep.subr.mxu0 0.0
    %505 = vmatpush1.msra.mxu0 0.0
    %506 = vmatprep.subr.mxu0 0.0
    %507 = vmatpush1.msra.mxu0 0.0
    %508 = vmatprep.subr.mxu0 0.0
    %509 = vmatpush1.msra.mxu0 0.0
    %510 = vmatprep.subr.mxu0 0.0
    %511 = vmatpush1.msra.mxu0 0.0
    %512 = vmatprep.subr.mxu0 0.0
    %513 = vmatpush1.msra.mxu0 0.0
    %514 = vmatprep.subr.mxu0 0.0
    %515 = vmatpush1.msra.mxu0 0.0
    %516 = vmatprep.subr.mxu0 0.0
    %517 = vmatpush1.msra.mxu0 0.0
    %518 = vmatprep.subr.mxu0 0.0
    %519 = vmatpush1.msra.mxu0 0.0
    %520 = vmatprep.subr.mxu0 0.0
    %521 = vmatpush1.msra.mxu0 0.0
    %522 = vmatprep.subr.mxu0 0.0
    %523 = vmatpush1.msra.mxu0 0.0
    %524 = vmatprep.subr.mxu0 0.0
    %525 = vmatpush1.msra.mxu0 0.0
    %526 = vmatprep.subr.mxu0 0.0
    %527 = vmatpush1.msra.mxu0 0.0
    %528 = vmatprep.subr.mxu0 0.0
    %529 = vmatpush1.msra.mxu0 0.0
    %530 = vmatprep.subr.mxu0 0.0
    %531 = vmatpush1.msra.mxu0 0.0
    %532 = vmatprep.subr.mxu0 0.0
    %533 = vmatpush1.msra.mxu0 0.0
    %534 = vmatprep.subr.mxu0 0.0
    %535 = vmatpush1.msra.mxu0 0.0
    %536 = vmatprep.subr.mxu0 0.0
    %537 = vmatpush1.msra.mxu0 0.0
    %538 = vmatprep.subr.mxu0 0.0
    %539 = vmatpush1.msra.mxu0 0.0
    %540 = vmatprep.subr.mxu0 0.0
    %541 = vmatpush1.msra.mxu0 0.0
    %542 = vmatprep.subr.mxu0 0.0
    %543 = vmatpush1.msra.mxu0 0.0
    %544 = vmatprep.mubr.f32.mxu0 0.0
    %545 = vmatmul.mubr.f32.gmra.mrb[0].mxu0 %v469
    %v546 = vpop.f32.mrb[0].mxu0
    %v547 = vadd.f32 %v450, %v546
    %v548 = vpop.f32.mrb[0].mxu0
    %v549 = vadd.f32 %v450, %v548
    %550 = vmatprep.mubr.f32.mxu0 0.0
    %551 = vmatmul.mubr.f32.gmra.mrb[0].mxu0 %v472
    %v552 = vpop.f32.mrb[0].mxu0
    %v553 = vadd.f32 %v455, %v552
    %v554 = vpop.f32.mrb[0].mxu0
    %v555 = vadd.f32 %v455, %v554
    %556 = vmatprep.mubr.f32.mxu0 0.0
    %557 = vmatmul.mubr.f32.gmra.mrb[0].mxu0 %v475
    %v558 = vpop.f32.mrb[0].mxu0
    %v559 = vadd.f32 %v460, %v558
    %v560 = vpop.f32.mrb[0].mxu0
    %v561 = vadd.f32 %v460, %v560
    %562 = vmatprep.mubr.f32.mxu0 0.0
    %563 = vmatmul.mubr.f32.gmra.mrb[0].mxu0 %v478
    %v564 = vpop.f32.mrb[0].mxu0
    %v565 = vadd.f32 %v465, %v564
    %v566 = vpop.f32.mrb[0].mxu0
    %v567 = vadd.f32 %v465, %v566
    %568 = vdwg.mxu0
    %569 = vmatprep.subr.mxu0 %v426
    %570 = vmatpush1.msra.mxu0 %v425
    %571 = vmatprep.subr.mxu0 %v430
    %572 = vmatpush1.msra.mxu0 %v429
    %573 = vmatprep.subr.mxu0 %v434
    %574 = vmatpush1.msra.mxu0 %v433
    %575 = vmatprep.subr.mxu0 %v438
    %576 = vmatpush1.msra.mxu0 %v437
    %577 = vmatprep.subr.mxu0 0.0
    %578 = vmatpush1.msra.mxu0 0.0
    %579 = vmatprep.subr.mxu0 0.0
    %580 = vmatpush1.msra.mxu0 0.0
    %581 = vmatprep.subr.mxu0 0.0
    %582 = vmatpush1.msra.mxu0 0.0
    %583 = vmatprep.subr.mxu0 0.0
    %584 = vmatpush1.msra.mxu0 0.0
    %585 = vmatprep.subr.mxu0 0.0
    %586 = vmatpush1.msra.mxu0 0.0
    %587 = vmatprep.subr.mxu0 0.0
    %588 = vmatpush1.msra.mxu0 0.0
    %589 = vmatprep.subr.mxu0 0.0
    %590 = vmatpush1.msra.mxu0 0.0
    %591 = vmatprep.subr.mxu0 0.0
    %592 = vmatpush1.msra.mxu0 0.0
    %593 = vmatprep.subr.mxu0 0.0
    %594 = vmatpush1.msra.mxu0 0.0
    %595 = vmatprep.subr.mxu0 0.0
    %596 = vmatpush1.msra.mxu0 0.0
    %597 = vmatprep.subr.mxu0 0.0
    %598 = vmatpush1.msra.mxu0 0.0
    %599 = vmatprep.subr.mxu0 0.0
    %600 = vmatpush1.msra.mxu0 0.0
    %601 = vmatprep.subr.mxu0 0.0
    %602 = vmatpush1.msra.mxu0 0.0
    %603 = vmatprep.subr.mxu0 0.0
    %604 = vmatpush1.msra.mxu0 0.0
    %605 = vmatprep.subr.mxu0 0.0
    %606 = vmatpush1.msra.mxu0 0.0
    %607 = vmatprep.subr.mxu0 0.0
    %608 = vmatpush1.msra.mxu0 0.0
    %609 = vmatprep.subr.mxu0 0.0
    %610 = vmatpush1.msra.mxu0 0.0
    %611 = vmatprep.subr.mxu0 0.0
    %612 = vmatpush1.msra.mxu0 0.0
    %613 = vmatprep.subr.mxu0 0.0
    %614 = vmatpush1.msra.mxu0 0.0
    %615 = vmatprep.subr.mxu0 0.0
    %616 = vmatpush1.msra.mxu0 0.0
    %617 = vmatprep.subr.mxu0 0.0
    %618 = vmatpush1.msra.mxu0 0.0
    %619 = vmatprep.subr.mxu0 0.0
    %620 = vmatpush1.msra.mxu0 0.0
    %621 = vmatprep.subr.mxu0 0.0
    %622 = vmatpush1.msra.mxu0 0.0
    %623 = vmatprep.subr.mxu0 0.0
    %624 = vmatpush1.msra.mxu0 0.0
    %625 = vmatprep.subr.mxu0 0.0
    %626 = vmatpush1.msra.mxu0 0.0
    %627 = vmatprep.subr.mxu0 0.0
    %628 = vmatpush1.msra.mxu0 0.0
    %629 = vmatprep.subr.mxu0 0.0
    %630 = vmatpush1.msra.mxu0 0.0
    %631 = vmatprep.subr.mxu0 0.0
    %632 = vmatpush1.msra.mxu0 0.0
    %633 = vmatprep.mubr.f32.mxu0 0.0
    %634 = vmatmul.mubr.f32.gmra.mrb[0].mxu0 %v469
    %v635 = vpop.f32.mrb[0].mxu0
    %v636 = vadd.f32 %v450, %v635
    %v637 = vpop.f32.mrb[0].mxu0
    %v638 = vadd.f32 %v450, %v637
    %639 = vmatprep.mubr.f32.mxu0 0.0
    %640 = vmatmul.mubr.f32.gmra.mrb[0].mxu0 %v472
    %v641 = vpop.f32.mrb[0].mxu0
    %v642 = vadd.f32 %v455, %v641
    %v643 = vpop.f32.mrb[0].mxu0
    %v644 = vadd.f32 %v455, %v643
    %645 = vmatprep.mubr.f32.mxu0 0.0
    %646 = vmatmul.mubr.f32.gmra.mrb[0].mxu0 %v475
    %v647 = vpop.f32.mrb[0].mxu0
    %v648 = vadd.f32 %v460, %v647
    %v649 = vpop.f32.mrb[0].mxu0
    %v650 = vadd.f32 %v460, %v649
    %651 = vmatprep.mubr.f32.mxu0 0.0
    %652 = vmatmul.mubr.f32.gmra.mrb[0].mxu0 %v478
    %v653 = vpop.f32.mrb[0].mxu0
    %v654 = vadd.f32 %v465, %v653
    %v655 = vpop.f32.mrb[0].mxu0
    %v656 = vadd.f32 %v465, %v655
    %657 = vdwg.mxu0
    %vm658 = vcmp.ge.f32.partialorder %v547, 0.0
    %vm659 = vcmp.ge.f32.partialorder %v549, 0.0
    %vm660 = vcmp.ge.f32.partialorder %v636, 0.0
    %vm661 = vcmp.ge.f32.partialorder %v638, 0.0
    %vm662 = vcmp.ge.f32.partialorder %v553, 0.0
    %vm663 = vcmp.ge.f32.partialorder %v555, 0.0
    %vm664 = vcmp.ge.f32.partialorder %v642, 0.0
    %vm665 = vcmp.ge.f32.partialorder %v644, 0.0
    %vm666 = vcmp.ge.f32.partialorder %v559, 0.0
    %vm667 = vcmp.ge.f32.partialorder %v561, 0.0
    %vm668 = vcmp.ge.f32.partialorder %v648, 0.0
    %vm669 = vcmp.ge.f32.partialorder %v650, 0.0
    %vm670 = vcmp.ge.f32.partialorder %v565, 0.0
    %vm671 = vcmp.ge.f32.partialorder %v567, 0.0
    %vm672 = vcmp.ge.f32.partialorder %v654, 0.0
    %vm673 = vcmp.ge.f32.partialorder %v656, 0.0
    %v674 = vmul.f32 %v547, 0.2
    %v675 = vmul.f32 %v549, 0.2
    %v676 = vmul.f32 %v636, 0.2
    %v677 = vmul.f32 %v638, 0.2
    %v678 = vmul.f32 %v553, 0.2
    %v679 = vmul.f32 %v555, 0.2
    %v680 = vmul.f32 %v642, 0.2
    %v681 = vmul.f32 %v644, 0.2
    %v682 = vmul.f32 %v559, 0.2
    %v683 = vmul.f32 %v561, 0.2
    %v684 = vmul.f32 %v648, 0.2
    %v685 = vmul.f32 %v650, 0.2
    %v686 = vmul.f32 %v565, 0.2
    %v687 = vmul.f32 %v567, 0.2
    %v688 = vmul.f32 %v654, 0.2
    %v689 = vmul.f32 %v656, 0.2
    %v690 = vsel %vm658, %v547, %v674
    %v691 = vsel %vm659, %v549, %v675
    %v692 = vsel %vm660, %v636, %v676
    %v693 = vsel %vm661, %v638, %v677
    %v694 = vsel %vm662, %v553, %v678
    %v695 = vsel %vm663, %v555, %v679
    %v696 = vsel %vm664, %v642, %v680
    %v697 = vsel %vm665, %v644, %v681
    %v698 = vsel %vm666, %v559, %v682
    %v699 = vsel %vm667, %v561, %v683
    %v700 = vsel %vm668, %v648, %v684
    %v701 = vsel %vm669, %v650, %v685
    %v702 = vsel %vm670, %v565, %v686
    %v703 = vsel %vm671, %v567, %v687
    %v704 = vsel %vm672, %v654, %v688
    %v705 = vsel %vm673, %v656, %v689
    %v706 = vld [vmem:[%s10] sm:$0x1]
    %v707 = vld [vmem:[#allocation2] sm:$0x1]
    %709 = vset.pattern.permute.xlu0 0
    %710 = vperm.xlu0 %709, %v707
    %v711 = vpop.permute.xlu0 %710
    %v713 = vlaneseq
    %v714 = vshrl.u32 %v713, 7
    %v715 = vsub.s32 0, %v714
    %v716 = vrot.slane %v711, %v715
    %v718 = vsel %vm467, %v706, 0
    %720 = vmatprep.subr.mxu0 %v691
    %721 = vmatpush1.msra.mxu0 %v690
    %722 = vmatprep.subr.mxu0 %v695
    %723 = vmatpush1.msra.mxu0 %v694
    %724 = vmatprep.subr.mxu0 %v699
    %725 = vmatpush1.msra.mxu0 %v698
    %726 = vmatprep.subr.mxu0 %v703
    %727 = vmatpush1.msra.mxu0 %v702
    %728 = vmatprep.subr.mxu0 0.0
    %729 = vmatpush1.msra.mxu0 0.0
    %730 = vmatprep.subr.mxu0 0.0
    %731 = vmatpush1.msra.mxu0 0.0
    %732 = vmatprep.subr.mxu0 0.0
    %733 = vmatpush1.msra.mxu0 0.0
    %734 = vmatprep.subr.mxu0 0.0
    %735 = vmatpush1.msra.mxu0 0.0
    %736 = vmatprep.subr.mxu0 0.0
    %737 = vmatpush1.msra.mxu0 0.0
    %738 = vmatprep.subr.mxu0 0.0
    %739 = vmatpush1.msra.mxu0 0.0
    %740 = vmatprep.subr.mxu0 0.0
    %741 = vmatpush1.msra.mxu0 0.0
    %742 = vmatprep.subr.mxu0 0.0
    %743 = vmatpush1.msra.mxu0 0.0
    %744 = vmatprep.subr.mxu0 0.0
    %745 = vmatpush1.msra.mxu0 0.0
    %746 = vmatprep.subr.mxu0 0.0
    %747 = vmatpush1.msra.mxu0 0.0
    %748 = vmatprep.subr.mxu0 0.0
    %749 = vmatpush1.msra.mxu0 0.0
    %750 = vmatprep.subr.mxu0 0.0
    %751 = vmatpush1.msra.mxu0 0.0
    %752 = vmatprep.subr.mxu0 0.0
    %753 = vmatpush1.msra.mxu0 0.0
    %754 = vmatprep.subr.mxu0 0.0
    %755 = vmatpush1.msra.mxu0 0.0
    %756 = vmatprep.subr.mxu0 0.0
    %757 = vmatpush1.msra.mxu0 0.0
    %758 = vmatprep.subr.mxu0 0.0
    %759 = vmatpush1.msra.mxu0 0.0
    %760 = vmatprep.subr.mxu0 0.0
    %761 = vmatpush1.msra.mxu0 0.0
    %762 = vmatprep.subr.mxu0 0.0
    %763 = vmatpush1.msra.mxu0 0.0
    %764 = vmatprep.subr.mxu0 0.0
    %765 = vmatpush1.msra.mxu0 0.0
    %766 = vmatprep.subr.mxu0 0.0
    %767 = vmatpush1.msra.mxu0 0.0
    %768 = vmatprep.subr.mxu0 0.0
    %769 = vmatpush1.msra.mxu0 0.0
    %770 = vmatprep.subr.mxu0 0.0
    %771 = vmatpush1.msra.mxu0 0.0
    %772 = vmatprep.subr.mxu0 0.0
    %773 = vmatpush1.msra.mxu0 0.0
    %774 = vmatprep.subr.mxu0 0.0
    %775 = vmatpush1.msra.mxu0 0.0
    %776 = vmatprep.subr.mxu0 0.0
    %777 = vmatpush1.msra.mxu0 0.0
    %778 = vmatprep.subr.mxu0 0.0
    %779 = vmatpush1.msra.mxu0 0.0
    %780 = vmatprep.subr.mxu0 0.0
    %781 = vmatpush1.msra.mxu0 0.0
    %782 = vmatprep.subr.mxu0 0.0
    %783 = vmatpush1.msra.mxu0 0.0
    %784 = vmatprep.mubr.f32.mxu0 0.0
    %785 = vmatmul.mubr.f32.gmra.mrb[0].mxu0 %v718
    %v786 = vpop.f32.mrb[0].mxu0
    %v787 = vadd.f32 %v716, %v786
    %v788 = vpop.f32.mrb[0].mxu0
    %v789 = vadd.f32 %v716, %v788
    %790 = vdwg.mxu0
    %791 = vmatprep.subr.mxu0 %v693
    %792 = vmatpush1.msra.mxu0 %v692
    %793 = vmatprep.subr.mxu0 %v697
    %794 = vmatpush1.msra.mxu0 %v696
    %795 = vmatprep.subr.mxu0 %v701
    %796 = vmatpush1.msra.mxu0 %v700
    %797 = vmatprep.subr.mxu0 %v705
    %798 = vmatpush1.msra.mxu0 %v704
    %799 = vmatprep.subr.mxu0 0.0
    %800 = vmatpush1.msra.mxu0 0.0
    %801 = vmatprep.subr.mxu0 0.0
    %802 = vmatpush1.msra.mxu0 0.0
    %803 = vmatprep.subr.mxu0 0.0
    %804 = vmatpush1.msra.mxu0 0.0
    %805 = vmatprep.subr.mxu0 0.0
    %806 = vmatpush1.msra.mxu0 0.0
    %807 = vmatprep.subr.mxu0 0.0
    %808 = vmatpush1.msra.mxu0 0.0
    %809 = vmatprep.subr.mxu0 0.0
    %810 = vmatpush1.msra.mxu0 0.0
    %811 = vmatprep.subr.mxu0 0.0
    %812 = vmatpush1.msra.mxu0 0.0
    %813 = vmatprep.subr.mxu0 0.0
    %814 = vmatpush1.msra.mxu0 0.0
    %815 = vmatprep.subr.mxu0 0.0
    %816 = vmatpush1.msra.mxu0 0.0
    %817 = vmatprep.subr.mxu0 0.0
    %818 = vmatpush1.msra.mxu0 0.0
    %819 = vmatprep.subr.mxu0 0.0
    %820 = vmatpush1.msra.mxu0 0.0
    %821 = vmatprep.subr.mxu0 0.0
    %822 = vmatpush1.msra.mxu0 0.0
    %823 = vmatprep.subr.mxu0 0.0
    %824 = vmatpush1.msra.mxu0 0.0
    %825 = vmatprep.subr.mxu0 0.0
    %826 = vmatpush1.msra.mxu0 0.0
    %827 = vmatprep.subr.mxu0 0.0
    %828 = vmatpush1.msra.mxu0 0.0
    %829 = vmatprep.subr.mxu0 0.0
    %830 = vmatpush1.msra.mxu0 0.0
    %831 = vmatprep.subr.mxu0 0.0
    %832 = vmatpush1.msra.mxu0 0.0
    %833 = vmatprep.subr.mxu0 0.0
    %834 = vmatpush1.msra.mxu0 0.0
    %835 = vmatprep.subr.mxu0 0.0
    %836 = vmatpush1.msra.mxu0 0.0
    %837 = vmatprep.subr.mxu0 0.0
    %838 = vmatpush1.msra.mxu0 0.0
    %839 = vmatprep.subr.mxu0 0.0
    %840 = vmatpush1.msra.mxu0 0.0
    %841 = vmatprep.subr.mxu0 0.0
    %842 = vmatpush1.msra.mxu0 0.0
    %843 = vmatprep.subr.mxu0 0.0
    %844 = vmatpush1.msra.mxu0 0.0
    %845 = vmatprep.subr.mxu0 0.0
    %846 = vmatpush1.msra.mxu0 0.0
    %847 = vmatprep.subr.mxu0 0.0
    %848 = vmatpush1.msra.mxu0 0.0
    %849 = vmatprep.subr.mxu0 0.0
    %850 = vmatpush1.msra.mxu0 0.0
    %851 = vmatprep.subr.mxu0 0.0
    %852 = vmatpush1.msra.mxu0 0.0
    %853 = vmatprep.subr.mxu0 0.0
    %854 = vmatpush1.msra.mxu0 0.0
    %855 = vmatprep.mubr.f32.mxu0 0.0
    %856 = vmatmul.mubr.f32.gmra.mrb[0].mxu0 %v718
    %v857 = vpop.f32.mrb[0].mxu0
    %v858 = vadd.f32 %v716, %v857
    %v859 = vpop.f32.mrb[0].mxu0
    %v860 = vadd.f32 %v716, %v859
    %861 = vdwg.mxu0
    %v862 = vsub.f32 0.0, %v787
    %v863 = vsub.f32 0.0, %v789
    %v864 = vsub.f32 0.0, %v858
    %v865 = vsub.f32 0.0, %v860
    %v866 = vmul.f32 %v862, 1.442695
    %v867 = vpow.pop %v866
    %v868 = vmul.f32 %v863, 1.442695
    %v869 = vpow.pop %v868
    %v870 = vmul.f32 %v864, 1.442695
    %v871 = vpow.pop %v870
    %v872 = vmul.f32 %v865, 1.442695
    %v873 = vpow.pop %v872
    %v874 = vadd.f32 %v867, 1.0
    %v875 = vadd.f32 %v869, 1.0
    %v876 = vadd.f32 %v871, 1.0
    %v877 = vadd.f32 %v873, 1.0
    %v878 = vrcp.pop %v874
    %v879 = vmul.f32 1.0, %v878
    %v880 = vrcp.pop %v875
    %v881 = vmul.f32 1.0, %v880
    %v882 = vrcp.pop %v876
    %v883 = vmul.f32 1.0, %v882
    %v884 = vrcp.pop %v877
    %v885 = vmul.f32 1.0, %v884
    %v886 = vadd.f32 %v52, 1.0
    %v887 = vmul.f32 %v886, 0.5
    %v888 = vlog2.pop %v879
    %v889 = vmul.f32 %v888, 0.6931472
    %v890 = vlog2.pop %v881
    %v891 = vmul.f32 %v890, 0.6931472
    %v892 = vlog2.pop %v883
    %v893 = vmul.f32 %v892, 0.6931472
    %v894 = vlog2.pop %v885
    %v895 = vmul.f32 %v894, 0.6931472
    %v900 = vcombine.low %v889, %v891
    %v901 = vcombine.low %v893, %v895
    %v903 = vunpack.c.l.s4 1966171168
    %v904 = vunpack.c.0.s8 %v903
    %v905 = vlaneseq
    %v906 = vshrl.u32 %v905, 7
    %v907 = vsub.s32 %v904, %v906
    %v908 = vrot.slane %v900, %v907
    %v910 = vunpack.c.l.s4 1966171168
    %v911 = vunpack.c.0.s8 %v910
    %v912 = vlaneseq
    %v913 = vshrl.u32 %v912, 7
    %v914 = vsub.s32 %v911, %v913
    %v915 = vrot.slane %v901, %v914
    %v916 = vcombine.low %v908, %v915
    %v918 = vunpack.c.l.s4 1966171168
    %v919 = vunpack.c.0.s8 %v918
    %v920 = vlaneseq
    %v921 = vshrl.u32 %v920, 7
    %v922 = vsub.s32 %v919, %v921
    %v923 = vrot.slane %v916, %v922
    %v925 = vmul.f32 %v887, %v923
    %v926 = vsub.f32 1.0, %v887
    %v927 = vsub.f32 1.0, %v879
    %v928 = vsub.f32 1.0, %v881
    %v929 = vsub.f32 1.0, %v883
    %v930 = vsub.f32 1.0, %v885
    %v931 = vlog2.pop %v927
    %v932 = vmul.f32 %v931, 0.6931472
    %v933 = vlog2.pop %v928
    %v934 = vmul.f32 %v933, 0.6931472
    %v935 = vlog2.pop %v929
    %v936 = vmul.f32 %v935, 0.6931472
    %v937 = vlog2.pop %v930
    %v938 = vmul.f32 %v937, 0.6931472
    %v943 = vcombine.low %v932, %v934
    %v944 = vcombine.low %v936, %v938
    %v946 = vunpack.c.l.s4 1966171168
    %v947 = vunpack.c.0.s8 %v946
    %v948 = vlaneseq
    %v949 = vshrl.u32 %v948, 7
    %v950 = vsub.s32 %v947, %v949
    %v951 = vrot.slane %v943, %v950
    %v953 = vunpack.c.l.s4 1966171168
    %v954 = vunpack.c.0.s8 %v953
    %v955 = vlaneseq
    %v956 = vshrl.u32 %v955, 7
    %v957 = vsub.s32 %v954, %v956
    %v958 = vrot.slane %v944, %v957
    %v959 = vcombine.low %v951, %v958
    %v961 = vunpack.c.l.s4 1966171168
    %v962 = vunpack.c.0.s8 %v961
    %v963 = vlaneseq
    %v964 = vshrl.u32 %v963, 7
    %v965 = vsub.s32 %v962, %v964
    %v966 = vrot.slane %v959, %v965
    %v968 = vmul.f32 %v926, %v966
    %v969 = vadd.f32 %v925, %v968
    %v970 = vsub.f32 0.0, %v969
    %v971 = vlaneseq
    %v972 = vand.u32 %v971, 127
    %v973 = vadd.s32 %v972, 128
    %v974 = vadd.s32 %v972, 256
    %v975 = vadd.s32 %v972, 384
    %s976 = smul.u32 0, 512
    %v977 = vstv %s976
    %v978 = vadd.s32 %v972, %v977
    %v979 = vadd.s32 %v973, %v977
    %v980 = vadd.s32 %v974, %v977
    %v981 = vadd.s32 %v975, %v977
    %vm982 = vcmp.lt.s32.totalorder %v978, 512
    %vm983 = vcmp.lt.s32.totalorder %v979, 512
    %vm984 = vcmp.lt.s32.totalorder %v980, 512
    %vm985 = vcmp.lt.s32.totalorder %v981, 512
    %v986 = vsel %vm982, 1, 0
    %v987 = vsel %vm983, 1, 0
    %v988 = vsel %vm984, 1, 0
    %v989 = vsel %vm985, 1, 0
    %v990 = vcvt.s32.f32 %v986
    %v991 = vcvt.s32.f32 %v987
    %v992 = vcvt.s32.f32 %v988
    %v993 = vcvt.s32.f32 %v989
    %v994 = vld [vmem:[#allocation3] sm:$0x1]
    %v999 = vcombine.low %v990, %v991
    %v1000 = vcombine.low %v992, %v993
    %v1002 = vunpack.c.l.s4 1966171168
    %v1003 = vunpack.c.0.s8 %v1002
    %v1004 = vlaneseq
    %v1005 = vshrl.u32 %v1004, 7
    %v1006 = vsub.s32 %v1003, %v1005
    %v1007 = vrot.slane %v999, %v1006
    %v1009 = vunpack.c.l.s4 1966171168
    %v1010 = vunpack.c.0.s8 %v1009
    %v1011 = vlaneseq
    %v1012 = vshrl.u32 %v1011, 7
    %v1013 = vsub.s32 %v1010, %v1012
    %v1014 = vrot.slane %v1000, %v1013
    %v1015 = vcombine.low %v1007, %v1014
    %v1017 = vunpack.c.l.s4 1966171168
    %v1018 = vunpack.c.0.s8 %v1017
    %v1019 = vlaneseq
    %v1020 = vshrl.u32 %v1019, 7
    %v1021 = vsub.s32 %v1018, %v1020
    %v1022 = vrot.slane %v1015, %v1021
    %v1024 = vmul.f32 %v970, %v1022
    %v1026 = vlaneseq
    %v1027 = vshrl.u32 %v1026, 7
    %v1028 = vsub.s32 0, %v1027
    %v1029 = vrot.slane %v1024, %v1028
    %v1030 = vlaneseq
    %v1031 = vshrl.u32 %v1030, 7
    %v1032 = vsub.s32 1, %v1031
    %v1033 = vrot.slane %v1024, %v1032
    %v1034 = vlaneseq
    %v1035 = vshrl.u32 %v1034, 7
    %v1036 = vsub.s32 2, %v1035
    %v1037 = vrot.slane %v1024, %v1036
    %v1038 = vlaneseq
    %v1039 = vshrl.u32 %v1038, 7
    %v1040 = vsub.s32 3, %v1039
    %v1041 = vrot.slane %v1024, %v1040
    %vm1046 = vcmask 1040384
    %v1047 = vsel %vm1046, %v1029, 0.0
    %v1048 = vsel %vm1046, %v1033, 0.0
    %v1049 = vadd.f32 %v1047, %v1048
    %v1050 = vsel %vm1046, %v1037, 0.0
    %v1051 = vadd.f32 %v1049, %v1050
    %v1052 = vsel %vm1046, %v1041, 0.0
    %v1053 = vadd.f32 %v1051, %v1052
    %1054 = vadd.xlane.f32.xlu0 %v1053
    %v1055 = vpop.xlane.xlu0 %1054
    %v1056 = vrot.slane %v1055, 4
    %v1057 = vadd.f32 %v1055, %v1056
    %v1058 = vrot.slane %v1057, 2
    %v1059 = vadd.f32 %v1057, %v1058
    %v1060 = vrot.slane %v1059, 1
    %v1061 = vadd.f32 %v1059, %v1060
    %s1062 = vtos %v1061
    %v1063 = vstv %s1062
    %v1064 = vadd.f32 %v994, %v1063
    %vm1065 = vcmask 0
    %1066 = vst.msk [vmem:[#allocation3] sm:$0x1] %vm1065, %v1064
    // Predicated region
    $region54: #{tpu_custom_call.1} parent=1 // pred_check
      _
    $region55: #{tpu_custom_call.1} parent=1 // pred_check_branch
      %1068 = sbr.rel (0) target = $region57
    $region56: #{tpu_custom_call.1} parent=1 // pred_region
      %s1070 = ssub.s32 16, 16
      %1071 = vsyncadd [#allocation4], %s1070
      %s1073 = sshll.u32 [#allocation3], 4
      %s1074 = int_to_ptr.vmem [resolvable:$true] %s1073
      %1076 = dma.vmem_to_hbm [thread:$0]  %s1074, 16, %s12, [#allocation4]
    $region57: #{tpu_custom_call.1} parent=1 // pred_fallthru
      _
    // Predicated region
    $region58: #{tpu_custom_call.1} parent=1 // pred_check
      _
    $region59: #{tpu_custom_call.1} parent=1 // pred_check_branch
      %1078 = sbr.rel (0) target = $region61
    $region60: #{tpu_custom_call.1} parent=1 // pred_region
      %1079 = dma.done [#allocation4], 16
    $region61: #{tpu_custom_call.1} parent=1 // pred_fallthru
      _
    %1080 = vsyncpa [#allocation4], 1

</llo_original>
